<compile_context>
chip_gen: v7x
topology: tpu7x:2x2x1
jax: 0.10.0
libtpu: 0.0.40
codegen_flags: <defaults>
</compile_context>

<pallas_src>
import jax
import jax.numpy as jnp
from jax import lax
from jax.experimental import pallas as pl
from jax.experimental.pallas import tpu as pltpu


def lde_kernel(x_ref, dic_ref, wei_ref, o_ref):
    x = x_ref[...].astype(jnp.float32)       # (Bb, T, C)
    dic = dic_ref[...].astype(jnp.float32)   # (D, C)
    wei = wei_ref[...].astype(jnp.float32)   # (1, D)

    Bb, T, C = x.shape
    D = dic.shape[0]

    # ---- Pairwise L2 distances, batched on the MXU -------------------------
    # One (Bb*T, C) x (D, C) contraction (contract C directly; no transpose).
    x2d = x.reshape(Bb * T, C)                                   # (Bb*T, C)
    xd = lax.dot_general(
        x2d, dic,
        dimension_numbers=(((1,), (1,)), ((), ())),
        preferred_element_type=jnp.float32)                      # (Bb*T, D)
    x2 = jnp.sum(x2d * x2d, axis=-1, keepdims=True)              # (Bb*T, 1)
    d2 = jnp.sum(dic * dic, axis=-1)[None, :]                    # (1, D)
    dist2 = jnp.maximum(x2 + d2 - 2.0 * xd, 0.0)
    dist = jnp.sqrt(dist2).reshape(Bb, T, D)                     # (Bb, T, D)

    # ---- 'att' network: softmax over the T axis of (-dist * wei + 0) -------
    logits = -dist * wei                                         # (Bb, T, D)
    m = jnp.max(logits, axis=1, keepdims=True)                   # (Bb, 1, D)
    e = jnp.exp(logits - m)                                      # (Bb, T, D)
    s1 = jnp.sum(e, axis=1, keepdims=True)                       # (Bb, 1, D)
    w = e * (1.0 / s1)                                           # softmax

    # w = w / (sum_t w + 1e-9)  (kept for exact parity with PyTorch; the sum is
    # ~1 so this is near-identity, but it is the module's stated semantics).
    s2 = jnp.sum(w, axis=1, keepdims=True)                       # (Bb, 1, D)
    w = w * (1.0 / (s2 + 1e-9))

    # ---- mean pooling -------------------------------------------------------
    # out[b,d,c] = sum_t w[b,t,d] * (x[b,t,c] - dic[d,c])
    #            = (w^T @ x)[b,d,c] - (sum_t w[b,t,d]) * dic[d,c]
    wsum = jnp.sum(w, axis=1)                                    # (Bb, D)
    wx = jnp.einsum('btd,btc->bdc', w, x,
                    preferred_element_type=jnp.float32)          # (Bb, D, C)
    out = wx - wsum[:, :, None] * dic[None, :, :]                # (Bb, D, C)

    # Lane-dense store: (Bb, D*C) with D*C a multiple of 128.
    o_ref[...] = out.reshape(Bb, D * C).astype(o_ref.dtype)


def lde_forward(x, dic, wei, *, block_b=None):
    """x: (B, T, C) f32; dic: (D, C); wei: (D,). Returns (B, D*C).

    block_b: batch elements per grid step. Default = B (whole batch, single
    grid step — best on v5e/v6e). On v7x, block_b = B // 2 shards the batch
    across the two TensorCores via the "parallel" grid axis.
    """
    B, T, C = x.shape
    D = dic.shape[0]
    if block_b is None:
        block_b = B
    assert B % block_b == 0, "block_b must divide B"
    grid = (B // block_b,)

    return pl.pallas_call(
        lde_kernel,
        out_shape=jax.ShapeDtypeStruct((B, D * C), jnp.float32),
        grid_spec=pltpu.PrefetchScalarGridSpec(
            num_scalar_prefetch=0,
            grid=grid,
            in_specs=[
                pl.BlockSpec((block_b, T, C), lambda b: (b, 0, 0)),
                pl.BlockSpec((D, C), lambda b: (0, 0)),
                pl.BlockSpec((1, D), lambda b: (0, 0)),
            ],
            out_specs=pl.BlockSpec((block_b, D * C), lambda b: (b, 0)),
        ),
        compiler_params=pltpu.CompilerParams(
            dimension_semantics=("parallel",)),
    )(x, dic, wei.reshape(1, D))


def lde_reference(x, dic, wei):
    # Pure-JAX reference mirroring the PyTorch forward exactly.
    r = x[:, :, None, :] - dic[None, None, :, :]            # (B, T, D, C)
    dist = jnp.linalg.norm(r, axis=-1)                      # (B, T, D)
    logits = -dist * wei                                    # bias = 0
    w = jax.nn.softmax(logits, axis=-2)                     # softmax over T
    w = w / (jnp.sum(w, axis=1, keepdims=True) + 1e-9)
    out = jnp.sum(w[..., None] * r, axis=1)                 # (B, D, C)
    return out.reshape(x.shape[0], -1)


if __name__ == "__main__":
    # Module hyperparams (synthetic, deterministic init).
    D = 8            # dictionary size
    input_dim = 32   # feature dim C
    B, T = 2, 16     # batch, sequence length

    key = jax.random.PRNGKey(0)
    kx, kd = jax.random.split(key)

    x = jax.random.normal(kx, (B, T, input_dim), dtype=jnp.float32)
    # nn.init.uniform_(dic, -1, 1)
    dic = jax.random.uniform(kd, (D, input_dim), dtype=jnp.float32,
                             minval=-1.0, maxval=1.0)
    # self.wei = ones(D); with_bias=False -> bias = 0 (constant, folded in).
    wei = jnp.ones((D,), dtype=jnp.float32)

    out = lde_forward(x, dic, wei)
    jax.block_until_ready(out)

    ref = lde_reference(x, dic, wei)
    assert out.shape == (B, D * input_dim)
    assert jnp.allclose(out, ref, atol=1e-4, rtol=1e-4), "mismatch vs reference"

    print("KERNEL_OK")
</pallas_src>

<mosaic_0001>
module attributes {stable_mosaic.version = 11 : i64} {
  func.func @lde_kernel(%arg0: i32, %arg1: memref<2x16x32xf32, #tpu.memory_space<vmem>>, %arg2: memref<8x32xf32, #tpu.memory_space<vmem>>, %arg3: memref<1x8xf32, #tpu.memory_space<vmem>>, %arg4: memref<2x256xf32, #tpu.memory_space<vmem>>) attributes {dimension_semantics = [#tpu.dimension_semantics<parallel>], iteration_bounds = array<i64: 1>, scalar_prefetch = 0 : i64, scratch_operands = 0 : i64, tpu.core_type = #tpu.core_type<tc>, window_params = [{transform_indices = @transform_0, window_bounds = array<i64: 2, 16, 32>}, {pipeline_mode = #tpu.pipeline_mode<synchronous>, transform_indices = @transform_1, window_bounds = array<i64: 8, 32>}, {pipeline_mode = #tpu.pipeline_mode<synchronous>, transform_indices = @transform_2, window_bounds = array<i64: 1, 8>}, {transform_indices = @transform_3, window_bounds = array<i64: 2, 256>}]} {
    %c0 = arith.constant 0 : index
    %c0_0 = arith.constant 0 : index
    %c0_1 = arith.constant 0 : index
    %0 = vector.load %arg1[%c0, %c0_0, %c0_1] : memref<2x16x32xf32, #tpu.memory_space<vmem>>, vector<2x16x32xf32>
    %c0_2 = arith.constant 0 : index
    %c0_3 = arith.constant 0 : index
    %1 = vector.load %arg2[%c0_2, %c0_3] : memref<8x32xf32, #tpu.memory_space<vmem>>, vector<8x32xf32>
    %c0_4 = arith.constant 0 : index
    %c0_5 = arith.constant 0 : index
    %2 = vector.load %arg3[%c0_4, %c0_5] : memref<1x8xf32, #tpu.memory_space<vmem>>, vector<1x8xf32>
    %3 = vector.shape_cast %0 : vector<2x16x32xf32> to vector<32x32xf32>
    %cst = arith.constant dense<0.000000e+00> : vector<32x8xf32>
    %4 = tpu.matmul %3, %1, %cst {dimension_numbers = #tpu.dot_dimension_numbers<[1], [1], [0], [0], [0, 0, 1, 0], [], []>} : vector<32x32xf32>, vector<8x32xf32>, vector<32x8xf32> -> vector<32x8xf32>
    %5 = arith.mulf %3, %3 : vector<32x32xf32>
    %cst_6 = arith.constant dense<0.000000e+00> : vector<32xf32>
    %6 = vector.multi_reduction <add>, %5, %cst_6 [1] : vector<32x32xf32> to vector<32xf32>
    %7 = vector.shape_cast %6 : vector<32xf32> to vector<32x1xf32>
    %8 = arith.mulf %1, %1 : vector<8x32xf32>
    %cst_7 = arith.constant dense<0.000000e+00> : vector<8xf32>
    %9 = vector.multi_reduction <add>, %8, %cst_7 [1] : vector<8x32xf32> to vector<8xf32>
    %10 = vector.shape_cast %9 : vector<8xf32> to vector<1x8xf32>
    %11 = vector.broadcast %7 : vector<32x1xf32> to vector<32x8xf32>
    %12 = vector.broadcast %10 : vector<1x8xf32> to vector<32x8xf32>
    %13 = arith.addf %11, %12 : vector<32x8xf32>
    %cst_8 = arith.constant 2.000000e+00 : f32
    %14 = vector.broadcast %cst_8 : f32 to vector<32x8xf32>
    %15 = arith.mulf %14, %4 : vector<32x8xf32>
    %16 = arith.subf %13, %15 : vector<32x8xf32>
    %cst_9 = arith.constant 0.000000e+00 : f32
    %17 = vector.broadcast %cst_9 : f32 to vector<32x8xf32>
    %18 = arith.maximumf %16, %17 : vector<32x8xf32>
    %19 = math.sqrt %18 : vector<32x8xf32>
    %20 = vector.shape_cast %19 : vector<32x8xf32> to vector<2x16x8xf32>
    %cst_10 = arith.constant 0.000000e+00 : f32
    %21 = vector.broadcast %cst_10 : f32 to vector<2x16x8xf32>
    %22 = arith.subf %21, %20 : vector<2x16x8xf32>
    %23 = vector.shape_cast %2 : vector<1x8xf32> to vector<1x1x8xf32>
    %24 = vector.broadcast %23 : vector<1x1x8xf32> to vector<2x16x8xf32>
    %25 = arith.mulf %22, %24 : vector<2x16x8xf32>
    %cst_11 = arith.constant dense<0xFF800000> : vector<2x8xf32>
    %26 = vector.multi_reduction <maximumf>, %25, %cst_11 [1] : vector<2x16x8xf32> to vector<2x8xf32>
    %27 = vector.shape_cast %26 : vector<2x8xf32> to vector<2x1x8xf32>
    %28 = vector.broadcast %27 : vector<2x1x8xf32> to vector<2x16x8xf32>
    %29 = arith.subf %25, %28 : vector<2x16x8xf32>
    %30 = math.exp %29 : vector<2x16x8xf32>
    %cst_12 = arith.constant dense<0.000000e+00> : vector<2x8xf32>
    %31 = vector.multi_reduction <add>, %30, %cst_12 [1] : vector<2x16x8xf32> to vector<2x8xf32>
    %32 = vector.shape_cast %31 : vector<2x8xf32> to vector<2x1x8xf32>
    %cst_13 = arith.constant 1.000000e+00 : f32
    %33 = vector.broadcast %cst_13 : f32 to vector<2x1x8xf32>
    %34 = arith.divf %33, %32 : vector<2x1x8xf32>
    %35 = vector.broadcast %34 : vector<2x1x8xf32> to vector<2x16x8xf32>
    %36 = arith.mulf %30, %35 : vector<2x16x8xf32>
    %cst_14 = arith.constant dense<0.000000e+00> : vector<2x8xf32>
    %37 = vector.multi_reduction <add>, %36, %cst_14 [1] : vector<2x16x8xf32> to vector<2x8xf32>
    %38 = vector.shape_cast %37 : vector<2x8xf32> to vector<2x1x8xf32>
    %cst_15 = arith.constant 9.99999971E-10 : f32
    %39 = vector.broadcast %cst_15 : f32 to vector<2x1x8xf32>
    %40 = arith.addf %38, %39 : vector<2x1x8xf32>
    %cst_16 = arith.constant 1.000000e+00 : f32
    %41 = vector.broadcast %cst_16 : f32 to vector<2x1x8xf32>
    %42 = arith.divf %41, %40 : vector<2x1x8xf32>
    %43 = vector.broadcast %42 : vector<2x1x8xf32> to vector<2x16x8xf32>
    %44 = arith.mulf %36, %43 : vector<2x16x8xf32>
    %cst_17 = arith.constant dense<0.000000e+00> : vector<2x8xf32>
    %45 = vector.multi_reduction <add>, %44, %cst_17 [1] : vector<2x16x8xf32> to vector<2x8xf32>
    "tpu.trace_start"() <{level = 10 : i32, message = "btd,btc->bdc"}> : () -> ()
    %cst_18 = arith.constant dense<0.000000e+00> : vector<2x8x32xf32>
    %46 = tpu.matmul %44, %0, %cst_18 {dimension_numbers = #tpu.dot_dimension_numbers<[1], [1], [2], [2], [0, 0, 0, 2, 1, 2], [0], [0]>} : vector<2x16x8xf32>, vector<2x16x32xf32>, vector<2x8x32xf32> -> vector<2x8x32xf32>
    "tpu.trace_stop"() : () -> ()
    %47 = vector.shape_cast %45 : vector<2x8xf32> to vector<2x8x1xf32>
    %48 = vector.shape_cast %1 : vector<8x32xf32> to vector<1x8x32xf32>
    %49 = vector.broadcast %47 : vector<2x8x1xf32> to vector<2x8x32xf32>
    %50 = vector.broadcast %48 : vector<1x8x32xf32> to vector<2x8x32xf32>
    %51 = arith.mulf %49, %50 : vector<2x8x32xf32>
    %52 = arith.subf %46, %51 : vector<2x8x32xf32>
    %53 = vector.shape_cast %52 : vector<2x8x32xf32> to vector<2x256xf32>
    %c0_19 = arith.constant 0 : index
    %c0_20 = arith.constant 0 : index
    %54 = vector.load %arg4[%c0_19, %c0_20] : memref<2x256xf32, #tpu.memory_space<vmem>>, vector<2x256xf32>
    tpu.vector_store %arg4[%c0_19, %c0_20], %53 {strides = array<i32>} : memref<2x256xf32, #tpu.memory_space<vmem>>, vector<2x256xf32>,
    return
  }
  func.func @transform_0(%arg0: i32) -> (i32, i32, i32) {
    %c0_i32 = arith.constant 0 : i32
    %c0_i32_0 = arith.constant 0 : i32
    %c0_i32_1 = arith.constant 0 : i32
    return %arg0, %c0_i32, %c0_i32_0 : i32, i32, i32
  }
  func.func @transform_1(%arg0: i32) -> (i32, i32) {
    %c0_i32 = arith.constant 0 : i32
    %c0_i32_0 = arith.constant 0 : i32
    %c0_i32_1 = arith.constant 0 : i32
    return %c0_i32, %c0_i32_0 : i32, i32
  }
  func.func @transform_2(%arg0: i32) -> (i32, i32) {
    %c0_i32 = arith.constant 0 : i32
    %c0_i32_0 = arith.constant 0 : i32
    %c0_i32_1 = arith.constant 0 : i32
    return %c0_i32, %c0_i32_0 : i32, i32
  }
  func.func @transform_3(%arg0: i32) -> (i32, i32) {
    %c0_i32 = arith.constant 0 : i32
    %c0_i32_0 = arith.constant 0 : i32
    return %arg0, %c0_i32 : i32, i32
  }
}

</mosaic_0001>

<llo_original>
// kernel: tpu_custom_call.1
$region0: #{tpu_custom_call.1}
  #allocation0 [shape = 'u32[]', space=smem, size = 0x4, offset = 0x4, fixed_abs, tag = 'smem constant byte address 0x4 - core index']
  #allocation1 [shape = 'u32[144,128]{1,0:T(1,128)}', space=vmem, size = 0x12000, scoped, tag = 'internal scratch']
  %s0 = inlined_call_operand.hbm [shape: f32[2,16,32], index: 0, kind: input, shape index: {}]
  %s1 = inlined_call_operand.hbm [shape: f32[8,32], index: 1, kind: input, shape index: {}]
  %s2 = inlined_call_operand.vmem [shape: f32[1,8], index: 2, kind: input, shape index: {}]
  %s3 = inlined_call_operand.hbm [shape: f32[2,256], index: 3, kind: output, shape index: {}]
  %s4 = sld [smem:[#allocation0]]
  $region30: #{tpu_custom_call.1} parent=0
    _
  %s6 = ssub.s32 1, %s4
  %s7 = scalar_select 0, %s6, %s4
  $region1: #{tpu_custom_call.1} parent=0
    #allocation2 [shape = 'u8[16384]{0}', space=vmem, size = 0x4000, scoped, tag = 'input window, operand 0, single buffered']
    #allocation3 [shape = 's32[1]{0}', space=sflag, size = 0x4, scoped, tag = 'scoped memory for tpu_custom_call.1']
    #allocation4 [shape = 's32[1]{0}', space=sflag, size = 0x4, scoped, tag = 'scoped memory for tpu_custom_call.1']
    #allocation5 [shape = 'u8[4096]{0}', space=vmem, size = 0x1000, scoped, tag = 'input window, operand 1, single buffered']
    #allocation6 [shape = 's32[1]{0}', space=sflag, size = 0x4, scoped, tag = 'scoped memory for tpu_custom_call.1']
    #allocation7 [shape = 'u8[2048]{0}', space=vmem, size = 0x800, scoped, tag = 'output window, operand 0, single buffered']
    %8 = vsyncpa [#allocation3], 0
    %9 = vsyncpa [#allocation6], 0
    %10 = vsyncpa [#allocation4], 0
    // Predicated region
    $region2: #{tpu_custom_call.1} parent=1 // pred_check
      _
    $region3: #{tpu_custom_call.1} parent=1 // pred_check_branch
      %12 = sbr.rel (0) target = $region5
    $region4: #{tpu_custom_call.1} parent=1 // pred_region
      %s14 = ssub.s32 512, 512
      %15 = vsyncadd [#allocation3], %s14
      %s16 = sshll.u32 [#allocation2], 4
      %s17 = int_to_ptr.vmem [resolvable:$true] %s16
      %22 = dma.hbm_to_vmem [thread:$0]  %s0, 512, %s17, [#allocation3], 128, 128, 8
    $region5: #{tpu_custom_call.1} parent=1 // pred_fallthru
      _
    // Predicated region
    $region6: #{tpu_custom_call.1} parent=1 // pred_check
      _
    $region7: #{tpu_custom_call.1} parent=1 // pred_check_branch
      %24 = sbr.rel (0) target = $region9
    $region8: #{tpu_custom_call.1} parent=1 // pred_region
      %s26 = ssub.s32 128, 128
      %27 = vsyncadd [#allocation6], %s26
      %s29 = sshll.u32 [#allocation5], 4
      %s30 = int_to_ptr.vmem [resolvable:$true] %s29
      %32 = dma.hbm_to_vmem [thread:$0]  %s1, 128, %s30, [#allocation6]
    $region9: #{tpu_custom_call.1} parent=1 // pred_fallthru
      _
    // Predicated region
    $region10: #{tpu_custom_call.1} parent=1 // pred_check
      _
    $region11: #{tpu_custom_call.1} parent=1 // pred_check_branch
      %34 = sbr.rel (0) target = $region13
    $region12: #{tpu_custom_call.1} parent=1 // pred_region
      _
    $region13: #{tpu_custom_call.1} parent=1 // pred_fallthru
      _
    // Predicated region
    $region14: #{tpu_custom_call.1} parent=1 // pred_check
      _
    $region15: #{tpu_custom_call.1} parent=1 // pred_check_branch
      %36 = sbr.rel (0) target = $region17
    $region16: #{tpu_custom_call.1} parent=1 // pred_region
      %37 = dma.done [#allocation3], 512
    $region17: #{tpu_custom_call.1} parent=1 // pred_fallthru
      _
    // Predicated region
    $region18: #{tpu_custom_call.1} parent=1 // pred_check
      _
    $region19: #{tpu_custom_call.1} parent=1 // pred_check_branch
      %39 = sbr.rel (0) target = $region21
    $region20: #{tpu_custom_call.1} parent=1 // pred_region
      %40 = dma.done [#allocation6], 128
    $region21: #{tpu_custom_call.1} parent=1 // pred_fallthru
      _
    %v41 = vld [vmem:[#allocation2] sm:$0xff]
    %v42 = vld [vmem:[#allocation2 + $0x8] sm:$0xff]
    %v43 = vld [vmem:[#allocation2 + $0x10] sm:$0xff]
    %v44 = vld [vmem:[#allocation2 + $0x18] sm:$0xff]
    %v45 = vld [vmem:[#allocation5] sm:$0xff]
    %v46 = vld [vmem:[%s2] sm:$0x1]
    %vm47 = vcmask 261120
    %v49 = vsel %vm47, %v41, 0
    %v52 = vsel %vm47, %v42, 0
    %v55 = vsel %vm47, %v43, 0
    %v58 = vsel %vm47, %v44, 0
    %v61 = vsel %vm47, %v45, 0
    %63 = vmatprep.subr.mxu0 0.0
    %64 = vmatpush1.xpose.msra.mxu0 %v61
    %65 = vmatprep.subr.mxu0 0.0
    %66 = vmatpush1.xpose.msra.mxu0 0.0
    %67 = vmatprep.subr.mxu0 0.0
    %68 = vmatpush1.xpose.msra.mxu0 0.0
    %69 = vmatprep.subr.mxu0 0.0
    %70 = vmatpush1.xpose.msra.mxu0 0.0
    %71 = vmatprep.subr.mxu0 0.0
    %72 = vmatpush1.xpose.msra.mxu0 0.0
    %73 = vmatprep.subr.mxu0 0.0
    %74 = vmatpush1.xpose.msra.mxu0 0.0
    %75 = vmatprep.subr.mxu0 0.0
    %76 = vmatpush1.xpose.msra.mxu0 0.0
    %77 = vmatprep.subr.mxu0 0.0
    %78 = vmatpush1.xpose.msra.mxu0 0.0
    %79 = vmatprep.subr.mxu0 0.0
    %80 = vmatpush1.xpose.msra.mxu0 0.0
    %81 = vmatprep.subr.mxu0 0.0
    %82 = vmatpush1.xpose.msra.mxu0 0.0
    %83 = vmatprep.subr.mxu0 0.0
    %84 = vmatpush1.xpose.msra.mxu0 0.0
    %85 = vmatprep.subr.mxu0 0.0
    %86 = vmatpush1.xpose.msra.mxu0 0.0
    %87 = vmatprep.subr.mxu0 0.0
    %88 = vmatpush1.xpose.msra.mxu0 0.0
    %89 = vmatprep.subr.mxu0 0.0
    %90 = vmatpush1.xpose.msra.mxu0 0.0
    %91 = vmatprep.subr.mxu0 0.0
    %92 = vmatpush1.xpose.msra.mxu0 0.0
    %93 = vmatprep.subr.mxu0 0.0
    %94 = vmatpush1.xpose.msra.mxu0 0.0
    %95 = vmatprep.subr.mxu0 0.0
    %96 = vmatpush1.xpose.msra.mxu0 0.0
    %97 = vmatprep.subr.mxu0 0.0
    %98 = vmatpush1.xpose.msra.mxu0 0.0
    %99 = vmatprep.subr.mxu0 0.0
    %100 = vmatpush1.xpose.msra.mxu0 0.0
    %101 = vmatprep.subr.mxu0 0.0
    %102 = vmatpush1.xpose.msra.mxu0 0.0
    %103 = vmatprep.subr.mxu0 0.0
    %104 = vmatpush1.xpose.msra.mxu0 0.0
    %105 = vmatprep.subr.mxu0 0.0
    %106 = vmatpush1.xpose.msra.mxu0 0.0
    %107 = vmatprep.subr.mxu0 0.0
    %108 = vmatpush1.xpose.msra.mxu0 0.0
    %109 = vmatprep.subr.mxu0 0.0
    %110 = vmatpush1.xpose.msra.mxu0 0.0
    %111 = vmatprep.subr.mxu0 0.0
    %112 = vmatpush1.xpose.msra.mxu0 0.0
    %113 = vmatprep.subr.mxu0 0.0
    %114 = vmatpush1.xpose.msra.mxu0 0.0
    %115 = vmatprep.subr.mxu0 0.0
    %116 = vmatpush1.xpose.msra.mxu0 0.0
    %117 = vmatprep.subr.mxu0 0.0
    %118 = vmatpush1.xpose.msra.mxu0 0.0
    %119 = vmatprep.subr.mxu0 0.0
    %120 = vmatpush1.xpose.msra.mxu0 0.0
    %121 = vmatprep.subr.mxu0 0.0
    %122 = vmatpush1.xpose.msra.mxu0 0.0
    %123 = vmatprep.subr.mxu0 0.0
    %124 = vmatpush1.xpose.msra.mxu0 0.0
    %125 = vmatprep.subr.mxu0 0.0
    %126 = vmatpush1.xpose.msra.mxu0 0.0
    %127 = vmatprep.mubr.f32.mxu0 0.0
    %128 = vmatmul.mubr.f32.gmra.mrb[0].mxu0 %v49
    %v129 = vpop.f32.mrb[0].mxu0
    %v130 = vadd.f32 0.0, %v129
    %v131 = vpop.f32.mrb[0].mxu0
    %132 = vmatprep.mubr.f32.mxu0 0.0
    %133 = vmatmul.mubr.f32.gmra.mrb[0].mxu0 %v52
    %v134 = vpop.f32.mrb[0].mxu0
    %v135 = vadd.f32 0.0, %v134
    %v136 = vpop.f32.mrb[0].mxu0
    %137 = vmatprep.mubr.f32.mxu0 0.0
    %138 = vmatmul.mubr.f32.gmra.mrb[0].mxu0 %v55
    %v139 = vpop.f32.mrb[0].mxu0
    %v140 = vadd.f32 0.0, %v139
    %v141 = vpop.f32.mrb[0].mxu0
    %142 = vmatprep.mubr.f32.mxu0 0.0
    %143 = vmatmul.mubr.f32.gmra.mrb[0].mxu0 %v58
    %v144 = vpop.f32.mrb[0].mxu0
    %v145 = vadd.f32 0.0, %v144
    %v146 = vpop.f32.mrb[0].mxu0
    %147 = vdwg.mxu0
    %v148 = vmul.f32 %v41, %v41
    %v149 = vmul.f32 %v42, %v42
    %v150 = vmul.f32 %v43, %v43
    %v151 = vmul.f32 %v44, %v44
    %v152 = vsel %vm47, %v148, 0.0
    %153 = vadd.xlane.f32.xlu0 %v152
    %v154 = vpop.xlane.xlu0 %153
    %v155 = vsel %vm47, %v149, 0.0
    %156 = vadd.xlane.f32.xlu0 %v155
    %v157 = vpop.xlane.xlu0 %156
    %v158 = vsel %vm47, %v150, 0.0
    %159 = vadd.xlane.f32.xlu0 %v158
    %v160 = vpop.xlane.xlu0 %159
    %v161 = vsel %vm47, %v151, 0.0
    %162 = vadd.xlane.f32.xlu0 %v161
    %v163 = vpop.xlane.xlu0 %162
    %v164 = vmul.f32 %v45, %v45
    %v165 = vsel %vm47, %v164, 0.0
    %166 = vadd.xlane.f32.xlu0 %v165
    %v167 = vpop.xlane.xlu0 %166
    %v169 = vlaneseq
    %v170 = vand.u32 %v169, 127
    %v171 = vlaneseq
    %v172 = vshrl.u32 %v171, 7
    %v173 = vsub.s32 %v170, %v172
    %v174 = vrot.slane %v167, %v173
    %vm175 = vcmask 1042434
    %v176 = vsel %vm175, %v174, %v174
    %vm177 = vcmask 1043459
    %v178 = vsel %vm177, %v174, %v176
    %vm179 = vcmask 1044484
    %v180 = vsel %vm179, %v174, %v178
    %vm181 = vcmask 1045509
    %v182 = vsel %vm181, %v174, %v180
    %vm183 = vcmask 1046534
    %v184 = vsel %vm183, %v174, %v182
    %vm185 = vcmask 1047559
    %v186 = vsel %vm185, %v174, %v184
    %v188 = vadd.f32 %v154, %v186
    %v189 = vadd.f32 %v157, %v186
    %v190 = vadd.f32 %v160, %v186
    %v191 = vadd.f32 %v163, %v186
    %v192 = vmul.f32 %v130, 2.0
    %v193 = vmul.f32 %v135, 2.0
    %v194 = vmul.f32 %v140, 2.0
    %v195 = vmul.f32 %v145, 2.0
    %v196 = vsub.f32 %v188, %v192
    %v197 = vsub.f32 %v189, %v193
    %v198 = vsub.f32 %v190, %v194
    %v199 = vsub.f32 %v191, %v195
    %v200 = vmax.f32 %v196, 0.0
    %v201 = vmax.f32 %v197, 0.0
    %v202 = vmax.f32 %v198, 0.0
    %v203 = vmax.f32 %v199, 0.0
    %v204 = vrsqrt.pop %v200
    %v205 = vmul.f32 %v200, %v204
    %vm206 = vcmp.eq.f32.partialorder %v200, inf
    %v207 = vsel %vm206, %v200, %v205
    %vm208 = vcmp.eq.f32.partialorder %v200, 0.0
    %v209 = vand.u32 %v200, 2147483648
    %v210 = vsel %vm208, %v209, %v207
    %v211 = vrsqrt.pop %v201
    %v212 = vmul.f32 %v201, %v211
    %vm213 = vcmp.eq.f32.partialorder %v201, inf
    %v214 = vsel %vm213, %v201, %v212
    %vm215 = vcmp.eq.f32.partialorder %v201, 0.0
    %v216 = vand.u32 %v201, 2147483648
    %v217 = vsel %vm215, %v216, %v214
    %v218 = vrsqrt.pop %v202
    %v219 = vmul.f32 %v202, %v218
    %vm220 = vcmp.eq.f32.partialorder %v202, inf
    %v221 = vsel %vm220, %v202, %v219
    %vm222 = vcmp.eq.f32.partialorder %v202, 0.0
    %v223 = vand.u32 %v202, 2147483648
    %v224 = vsel %vm222, %v223, %v221
    %v225 = vrsqrt.pop %v203
    %v226 = vmul.f32 %v203, %v225
    %vm227 = vcmp.eq.f32.partialorder %v203, inf
    %v228 = vsel %vm227, %v203, %v226
    %vm229 = vcmp.eq.f32.partialorder %v203, 0.0
    %v230 = vand.u32 %v203, 2147483648
    %v231 = vsel %vm229, %v230, %v228
    %v232 = vsub.f32 0.0, %v210
    %v233 = vsub.f32 0.0, %v217
    %v234 = vsub.f32 0.0, %v224
    %v235 = vsub.f32 0.0, %v231
    %v237 = vlaneseq
    %v238 = vshrl.u32 %v237, 7
    %v239 = vsub.s32 0, %v238
    %v240 = vrot.slane %v46, %v239
    %v242 = vmul.f32 %v232, %v240
    %v243 = vmul.f32 %v233, %v240
    %v244 = vmul.f32 %v234, %v240
    %v245 = vmul.f32 %v235, %v240
    %vm246 = vcmask 64512
    %v247 = vsel %vm246, %v242, -inf
    %v248 = vsel %vm246, %v243, -inf
    %v249 = vmax.f32 %v247, %v248
    %v250 = vrot.slane %v249, 4
    %v251 = vmax.f32 %v249, %v250
    %v252 = vrot.slane %v251, 2
    %v253 = vmax.f32 %v251, %v252
    %v254 = vrot.slane %v253, 1
    %v255 = vmax.f32 %v253, %v254
    %v256 = vsel %vm246, %v244, -inf
    %v257 = vsel %vm246, %v245, -inf
    %v258 = vmax.f32 %v256, %v257
    %v259 = vrot.slane %v258, 4
    %v260 = vmax.f32 %v258, %v259
    %v261 = vrot.slane %v260, 2
    %v262 = vmax.f32 %v260, %v261
    %v263 = vrot.slane %v262, 1
    %v264 = vmax.f32 %v262, %v263
    %v265 = vsub.f32 %v242, %v255
    %v266 = vsub.f32 %v243, %v255
    %v267 = vsub.f32 %v244, %v264
    %v268 = vsub.f32 %v245, %v264
    %v269 = vmul.f32 %v265, 1.442695
    %v270 = vpow.pop %v269
    %v271 = vmul.f32 %v266, 1.442695
    %v272 = vpow.pop %v271
    %v273 = vmul.f32 %v267, 1.442695
    %v274 = vpow.pop %v273
    %v275 = vmul.f32 %v268, 1.442695
    %v276 = vpow.pop %v275
    %v277 = vsel %vm246, %v270, 0.0
    %v278 = vsel %vm246, %v272, 0.0
    %v279 = vadd.f32 %v277, %v278
    %v280 = vrot.slane %v279, 4
    %v281 = vadd.f32 %v279, %v280
    %v282 = vrot.slane %v281, 2
    %v283 = vadd.f32 %v281, %v282
    %v284 = vrot.slane %v283, 1
    %v285 = vadd.f32 %v283, %v284
    %v286 = vsel %vm246, %v274, 0.0
    %v287 = vsel %vm246, %v276, 0.0
    %v288 = vadd.f32 %v286, %v287
    %v289 = vrot.slane %v288, 4
    %v290 = vadd.f32 %v288, %v289
    %v291 = vrot.slane %v290, 2
    %v292 = vadd.f32 %v290, %v291
    %v293 = vrot.slane %v292, 1
    %v294 = vadd.f32 %v292, %v293
    %v295 = vrcp.pop %v285
    %v296 = vmul.f32 1.0, %v295
    %v297 = vrcp.pop %v294
    %v298 = vmul.f32 1.0, %v297
    %v299 = vmul.f32 %v270, %v296
    %v300 = vmul.f32 %v272, %v296
    %v301 = vmul.f32 %v274, %v298
    %v302 = vmul.f32 %v276, %v298
    %v303 = vsel %vm246, %v299, 0.0
    %v304 = vsel %vm246, %v300, 0.0
    %v305 = vadd.f32 %v303, %v304
    %v306 = vrot.slane %v305, 4
    %v307 = vadd.f32 %v305, %v306
    %v308 = vrot.slane %v307, 2
    %v309 = vadd.f32 %v307, %v308
    %v310 = vrot.slane %v309, 1
    %v311 = vadd.f32 %v309, %v310
    %v312 = vsel %vm246, %v301, 0.0
    %v313 = vsel %vm246, %v302, 0.0
    %v314 = vadd.f32 %v312, %v313
    %v315 = vrot.slane %v314, 4
    %v316 = vadd.f32 %v314, %v315
    %v317 = vrot.slane %v316, 2
    %v318 = vadd.f32 %v316, %v317
    %v319 = vrot.slane %v318, 1
    %v320 = vadd.f32 %v318, %v319
    %v321 = vadd.f32 %v311, 1e-09
    %v322 = vadd.f32 %v320, 1e-09
    %v323 = vrcp.pop %v321
    %v324 = vmul.f32 1.0, %v323
    %v325 = vrcp.pop %v322
    %v326 = vmul.f32 1.0, %v325
    %v327 = vmul.f32 %v299, %v324
    %v328 = vmul.f32 %v300, %v324
    %v329 = vmul.f32 %v301, %v326
    %v330 = vmul.f32 %v302, %v326
    %v331 = vsel %vm246, %v327, 0.0
    %v332 = vsel %vm246, %v328, 0.0
    %v333 = vadd.f32 %v331, %v332
    %v334 = vrot.slane %v333, 4
    %v335 = vadd.f32 %v333, %v334
    %v336 = vrot.slane %v335, 2
    %v337 = vadd.f32 %v335, %v336
    %v338 = vrot.slane %v337, 1
    %v339 = vadd.f32 %v337, %v338
    %v340 = vsel %vm246, %v329, 0.0
    %v341 = vsel %vm246, %v330, 0.0
    %v342 = vadd.f32 %v340, %v341
    %v343 = vrot.slane %v342, 4
    %v344 = vadd.f32 %v342, %v343
    %v345 = vrot.slane %v344, 2
    %v346 = vadd.f32 %v344, %v345
    %v347 = vrot.slane %v346, 1
    %v348 = vadd.f32 %v346, %v347
    %349 = vxpose.xlu0.b32.start [1/16] %v327, 128
    %350 = vxpose.xlu0.b32.cont [2/16] %v328, 128
    %351 = vxpose.xlu0.b32.cont [3/16] 0.0, 128
    %352 = vxpose.xlu0.b32.cont [4/16] 0.0, 128
    %353 = vxpose.xlu0.b32.cont [5/16] 0.0, 128
    %354 = vxpose.xlu0.b32.cont [6/16] 0.0, 128
    %355 = vxpose.xlu0.b32.cont [7/16] 0.0, 128
    %356 = vxpose.xlu0.b32.cont [8/16] 0.0, 128
    %357 = vxpose.xlu0.b32.cont [9/16] 0.0, 128
    %358 = vxpose.xlu0.b32.cont [10/16] 0.0, 128
    %359 = vxpose.xlu0.b32.cont [11/16] 0.0, 128
    %360 = vxpose.xlu0.b32.cont [12/16] 0.0, 128
    %361 = vxpose.xlu0.b32.cont [13/16] 0.0, 128
    %362 = vxpose.xlu0.b32.cont [14/16] 0.0, 128
    %363 = vxpose.xlu0.b32.cont [15/16] 0.0, 128
    %364 = vxpose.xlu0.b32.end [16/16] 0.0, 128
    %v365 = vpop.trf.xlu0
    %v366 = vpop.trf.xlu0
    %v367 = vpop.trf.xlu0
    %v368 = vpop.trf.xlu0
    %v369 = vpop.trf.xlu0
    %v370 = vpop.trf.xlu0
    %v371 = vpop.trf.xlu0
    %v372 = vpop.trf.xlu0
    %v373 = vpop.trf.xlu0
    %v374 = vpop.trf.xlu0
    %v375 = vpop.trf.xlu0
    %v376 = vpop.trf.xlu0
    %v377 = vpop.trf.xlu0
    %v378 = vpop.trf.xlu0
    %v379 = vpop.trf.xlu0
    %v380 = vpop.trf.xlu0
    %vm381 = vcmask 130048
    %v383 = vsel %vm381, %v365, 0
    %385 = vmatprep.subr.mxu0 0.0
    %386 = vmatpush1.msra.mxu0 %v41
    %387 = vmatprep.subr.mxu0 0.0
    %388 = vmatpush1.msra.mxu0 %v42
    %389 = vmatprep.subr.mxu0 0.0
    %390 = vmatpush1.msra.mxu0 0.0
    %391 = vmatprep.subr.mxu0 0.0
    %392 = vmatpush1.msra.mxu0 0.0
    %393 = vmatprep.subr.mxu0 0.0
    %394 = vmatpush1.msra.mxu0 0.0
    %395 = vmatprep.subr.mxu0 0.0
    %396 = vmatpush1.msra.mxu0 0.0
    %397 = vmatprep.subr.mxu0 0.0
    %398 = vmatpush1.msra.mxu0 0.0
    %399 = vmatprep.subr.mxu0 0.0
    %400 = vmatpush1.msra.mxu0 0.0
    %401 = vmatprep.subr.mxu0 0.0
    %402 = vmatpush1.msra.mxu0 0.0
    %403 = vmatprep.subr.mxu0 0.0
    %404 = vmatpush1.msra.mxu0 0.0
    %405 = vmatprep.subr.mxu0 0.0
    %406 = vmatpush1.msra.mxu0 0.0
    %407 = vmatprep.subr.mxu0 0.0
    %408 = vmatpush1.msra.mxu0 0.0
    %409 = vmatprep.subr.mxu0 0.0
    %410 = vmatpush1.msra.mxu0 0.0
    %411 = vmatprep.subr.mxu0 0.0
    %412 = vmatpush1.msra.mxu0 0.0
    %413 = vmatprep.subr.mxu0 0.0
    %414 = vmatpush1.msra.mxu0 0.0
    %415 = vmatprep.subr.mxu0 0.0
    %416 = vmatpush1.msra.mxu0 0.0
    %417 = vmatprep.subr.mxu0 0.0
    %418 = vmatpush1.msra.mxu0 0.0
    %419 = vmatprep.subr.mxu0 0.0
    %420 = vmatpush1.msra.mxu0 0.0
    %421 = vmatprep.subr.mxu0 0.0
    %422 = vmatpush1.msra.mxu0 0.0
    %423 = vmatprep.subr.mxu0 0.0
    %424 = vmatpush1.msra.mxu0 0.0
    %425 = vmatprep.subr.mxu0 0.0
    %426 = vmatpush1.msra.mxu0 0.0
    %427 = vmatprep.subr.mxu0 0.0
    %428 = vmatpush1.msra.mxu0 0.0
    %429 = vmatprep.subr.mxu0 0.0
    %430 = vmatpush1.msra.mxu0 0.0
    %431 = vmatprep.subr.mxu0 0.0
    %432 = vmatpush1.msra.mxu0 0.0
    %433 = vmatprep.subr.mxu0 0.0
    %434 = vmatpush1.msra.mxu0 0.0
    %435 = vmatprep.subr.mxu0 0.0
    %436 = vmatpush1.msra.mxu0 0.0
    %437 = vmatprep.subr.mxu0 0.0
    %438 = vmatpush1.msra.mxu0 0.0
    %439 = vmatprep.subr.mxu0 0.0
    %440 = vmatpush1.msra.mxu0 0.0
    %441 = vmatprep.subr.mxu0 0.0
    %442 = vmatpush1.msra.mxu0 0.0
    %443 = vmatprep.subr.mxu0 0.0
    %444 = vmatpush1.msra.mxu0 0.0
    %445 = vmatprep.subr.mxu0 0.0
    %446 = vmatpush1.msra.mxu0 0.0
    %447 = vmatprep.subr.mxu0 0.0
    %448 = vmatpush1.msra.mxu0 0.0
    %449 = vmatprep.mubr.f32.mxu0 0.0
    %450 = vmatmul.mubr.f32.gmra.mrb[0].mxu0 %v383
    %v451 = vpop.f32.mrb[0].mxu0
    %v452 = vadd.f32 0.0, %v451
    %v453 = vpop.f32.mrb[0].mxu0
    %454 = vdwg.mxu0
    %455 = vxpose.xlu0.b32.start [1/16] %v329, 128
    %456 = vxpose.xlu0.b32.cont [2/16] %v330, 128
    %457 = vxpose.xlu0.b32.cont [3/16] 0.0, 128
    %458 = vxpose.xlu0.b32.cont [4/16] 0.0, 128
    %459 = vxpose.xlu0.b32.cont [5/16] 0.0, 128
    %460 = vxpose.xlu0.b32.cont [6/16] 0.0, 128
    %461 = vxpose.xlu0.b32.cont [7/16] 0.0, 128
    %462 = vxpose.xlu0.b32.cont [8/16] 0.0, 128
    %463 = vxpose.xlu0.b32.cont [9/16] 0.0, 128
    %464 = vxpose.xlu0.b32.cont [10/16] 0.0, 128
    %465 = vxpose.xlu0.b32.cont [11/16] 0.0, 128
    %466 = vxpose.xlu0.b32.cont [12/16] 0.0, 128
    %467 = vxpose.xlu0.b32.cont [13/16] 0.0, 128
    %468 = vxpose.xlu0.b32.cont [14/16] 0.0, 128
    %469 = vxpose.xlu0.b32.cont [15/16] 0.0, 128
    %470 = vxpose.xlu0.b32.end [16/16] 0.0, 128
    %v471 = vpop.trf.xlu0
    %v472 = vpop.trf.xlu0
    %v473 = vpop.trf.xlu0
    %v474 = vpop.trf.xlu0
    %v475 = vpop.trf.xlu0
    %v476 = vpop.trf.xlu0
    %v477 = vpop.trf.xlu0
    %v478 = vpop.trf.xlu0
    %v479 = vpop.trf.xlu0
    %v480 = vpop.trf.xlu0
    %v481 = vpop.trf.xlu0
    %v482 = vpop.trf.xlu0
    %v483 = vpop.trf.xlu0
    %v484 = vpop.trf.xlu0
    %v485 = vpop.trf.xlu0
    %v486 = vpop.trf.xlu0
    %v488 = vsel %vm381, %v471, 0
    %490 = vmatprep.subr.mxu0 0.0
    %491 = vmatpush1.msra.mxu0 %v43
    %492 = vmatprep.subr.mxu0 0.0
    %493 = vmatpush1.msra.mxu0 %v44
    %494 = vmatprep.subr.mxu0 0.0
    %495 = vmatpush1.msra.mxu0 0.0
    %496 = vmatprep.subr.mxu0 0.0
    %497 = vmatpush1.msra.mxu0 0.0
    %498 = vmatprep.subr.mxu0 0.0
    %499 = vmatpush1.msra.mxu0 0.0
    %500 = vmatprep.subr.mxu0 0.0
    %501 = vmatpush1.msra.mxu0 0.0
    %502 = vmatprep.subr.mxu0 0.0
    %503 = vmatpush1.msra.mxu0 0.0
    %504 = vmatprep.subr.mxu0 0.0
    %505 = vmatpush1.msra.mxu0 0.0
    %506 = vmatprep.subr.mxu0 0.0
    %507 = vmatpush1.msra.mxu0 0.0
    %508 = vmatprep.subr.mxu0 0.0
    %509 = vmatpush1.msra.mxu0 0.0
    %510 = vmatprep.subr.mxu0 0.0
    %511 = vmatpush1.msra.mxu0 0.0
    %512 = vmatprep.subr.mxu0 0.0
    %513 = vmatpush1.msra.mxu0 0.0
    %514 = vmatprep.subr.mxu0 0.0
    %515 = vmatpush1.msra.mxu0 0.0
    %516 = vmatprep.subr.mxu0 0.0
    %517 = vmatpush1.msra.mxu0 0.0
    %518 = vmatprep.subr.mxu0 0.0
    %519 = vmatpush1.msra.mxu0 0.0
    %520 = vmatprep.subr.mxu0 0.0
    %521 = vmatpush1.msra.mxu0 0.0
    %522 = vmatprep.subr.mxu0 0.0
    %523 = vmatpush1.msra.mxu0 0.0
    %524 = vmatprep.subr.mxu0 0.0
    %525 = vmatpush1.msra.mxu0 0.0
    %526 = vmatprep.subr.mxu0 0.0
    %527 = vmatpush1.msra.mxu0 0.0
    %528 = vmatprep.subr.mxu0 0.0
    %529 = vmatpush1.msra.mxu0 0.0
    %530 = vmatprep.subr.mxu0 0.0
    %531 = vmatpush1.msra.mxu0 0.0
    %532 = vmatprep.subr.mxu0 0.0
    %533 = vmatpush1.msra.mxu0 0.0
    %534 = vmatprep.subr.mxu0 0.0
    %535 = vmatpush1.msra.mxu0 0.0
    %536 = vmatprep.subr.mxu0 0.0
    %537 = vmatpush1.msra.mxu0 0.0
    %538 = vmatprep.subr.mxu0 0.0
    %539 = vmatpush1.msra.mxu0 0.0
    %540 = vmatprep.subr.mxu0 0.0
    %541 = vmatpush1.msra.mxu0 0.0
    %542 = vmatprep.subr.mxu0 0.0
    %543 = vmatpush1.msra.mxu0 0.0
    %544 = vmatprep.subr.mxu0 0.0
    %545 = vmatpush1.msra.mxu0 0.0
    %546 = vmatprep.subr.mxu0 0.0
    %547 = vmatpush1.msra.mxu0 0.0
    %548 = vmatprep.subr.mxu0 0.0
    %549 = vmatpush1.msra.mxu0 0.0
    %550 = vmatprep.subr.mxu0 0.0
    %551 = vmatpush1.msra.mxu0 0.0
    %552 = vmatprep.subr.mxu0 0.0
    %553 = vmatpush1.msra.mxu0 0.0
    %554 = vmatprep.mubr.f32.mxu0 0.0
    %555 = vmatmul.mubr.f32.gmra.mrb[0].mxu0 %v488
    %v556 = vpop.f32.mrb[0].mxu0
    %v557 = vadd.f32 0.0, %v556
    %v558 = vpop.f32.mrb[0].mxu0
    %559 = vdwg.mxu0
    %561 = vbcast.lane.b32.xlu0 %v339, 256
    %v562 = vpop.permute.xlu0 %561
    %564 = vbcast.lane.b32.xlu0 %v348, 256
    %v565 = vpop.permute.xlu0 %564
    %v566 = vmul.f32 %v562, %v45
    %v567 = vmul.f32 %v565, %v45
    %v568 = vsub.f32 %v452, %v566
    %v569 = vsub.f32 %v557, %v567
    %v570 = vcombine.high %v568, 0.0
    %v572 = vunpack.c.l.s4 1983009808
    %v573 = vunpack.c.0.s8 %v572
    %v574 = vlaneseq
    %v575 = vshrl.u32 %v574, 7
    %v576 = vsub.s32 %v573, %v575
    %v577 = vrot.slane %v568, %v576
    %v579 = vunpack.c.l.s4 1983009808
    %v580 = vunpack.c.0.s8 %v579
    %v581 = vlaneseq
    %v582 = vshrl.u32 %v581, 7
    %v583 = vsub.s32 %v580, %v582
    %v584 = vrot.slane %v570, %v583
    %v585 = vcombine.high %v569, 0.0
    %v587 = vunpack.c.l.s4 1983009808
    %v588 = vunpack.c.0.s8 %v587
    %v589 = vlaneseq
    %v590 = vshrl.u32 %v589, 7
    %v591 = vsub.s32 %v588, %v590
    %v592 = vrot.slane %v569, %v591
    %v594 = vunpack.c.l.s4 1983009808
    %v595 = vunpack.c.0.s8 %v594
    %v596 = vlaneseq
    %v597 = vshrl.u32 %v596, 7
    %v598 = vsub.s32 %v595, %v597
    %v599 = vrot.slane %v585, %v598
    %v600 = vcombine.low %v577, %v592
    %v601 = vcombine.high %v577, %v592
    %v603 = vunpack.c.l.s4 1934713408
    %v604 = vunpack.c.0.s8 %v603
    %v605 = vlaneseq
    %v606 = vshrl.u32 %v605, 7
    %v607 = vsub.s32 %v604, %v606
    %v608 = vrot.slane %v600, %v607
    %v610 = vunpack.c.l.s4 1934713408
    %v611 = vunpack.c.0.s8 %v610
    %v612 = vlaneseq
    %v613 = vshrl.u32 %v612, 7
    %v614 = vsub.s32 %v611, %v613
    %v615 = vrot.slane %v601, %v614
    %v616 = vcombine.low %v584, %v599
    %v617 = vcombine.high %v584, %v599
    %v619 = vunpack.c.l.s4 1934713408
    %v620 = vunpack.c.0.s8 %v619
    %v621 = vlaneseq
    %v622 = vshrl.u32 %v621, 7
    %v623 = vsub.s32 %v620, %v622
    %v624 = vrot.slane %v616, %v623
    %v626 = vunpack.c.l.s4 1934713408
    %v627 = vunpack.c.0.s8 %v626
    %v628 = vlaneseq
    %v629 = vshrl.u32 %v628, 7
    %v630 = vsub.s32 %v627, %v629
    %v631 = vrot.slane %v617, %v630
    %v632 = vcombine.high %v608, 0.0
    %v633 = vcombine.high %v615, 0.0
    %v634 = vcombine.high %v624, 0.0
    %v635 = vcombine.high %v631, 0.0
    %637 = vrot.lane.b32.xlu0 %v632, 32
    %v638 = vpop.permute.xlu0 %637
    %641 = vrot.lane.b32.xlu0 %v615, 64
    %v642 = vpop.permute.xlu0 %641
    %645 = vrot.lane.b32.xlu0 %v633, 96
    %v646 = vpop.permute.xlu0 %645
    %649 = vrot.lane.b32.xlu0 %v634, 32
    %v650 = vpop.permute.xlu0 %649
    %653 = vrot.lane.b32.xlu0 %v631, 64
    %v654 = vpop.permute.xlu0 %653
    %657 = vrot.lane.b32.xlu0 %v635, 96
    %v658 = vpop.permute.xlu0 %657
    %v660 = vsel %vm47, %v608, %v638
    %vm661 = vcmask 523264
    %v662 = vsel %vm661, %v660, %v642
    %vm663 = vcmask 785408
    %v664 = vsel %vm663, %v662, %v646
    %v665 = vsel %vm47, %v624, %v650
    %v666 = vsel %vm661, %v665, %v654
    %v667 = vsel %vm663, %v666, %v658
    %v670 = vcombine.low %v664, %v667
    %v672 = vunpack.c.l.s4 1983009808
    %v673 = vunpack.c.0.s8 %v672
    %v674 = vlaneseq
    %v675 = vshrl.u32 %v674, 7
    %v676 = vsub.s32 %v673, %v675
    %v677 = vrot.slane %v670, %v676
    %679 = vst [vmem:[#allocation7] sm:$0xf] %v677
    // Predicated region
    $region22: #{tpu_custom_call.1} parent=1 // pred_check
      _
    $region23: #{tpu_custom_call.1} parent=1 // pred_check_branch
      %681 = sbr.rel (0) target = $region25
    $region24: #{tpu_custom_call.1} parent=1 // pred_region
      %s683 = ssub.s32 64, 64
      %684 = vsyncadd [#allocation4], %s683
      %s686 = sshll.u32 [#allocation7], 4
      %s687 = int_to_ptr.vmem [resolvable:$true] %s686
      %689 = dma.vmem_to_hbm [thread:$0]  %s687, 64, %s3, [#allocation4]
    $region25: #{tpu_custom_call.1} parent=1 // pred_fallthru
      _
    // Predicated region
    $region26: #{tpu_custom_call.1} parent=1 // pred_check
      _
    $region27: #{tpu_custom_call.1} parent=1 // pred_check_branch
      %691 = sbr.rel (0) target = $region29
    $region28: #{tpu_custom_call.1} parent=1 // pred_region
      %692 = dma.done [#allocation4], 64
    $region29: #{tpu_custom_call.1} parent=1 // pred_fallthru
      _
    %693 = vsyncpa [#allocation3], 1
    %694 = vsyncpa [#allocation6], 1
    %695 = vsyncpa [#allocation4], 1

</llo_original>
